<compile_context>
chip_gen: v5e
topology: v5e:2x2
jax: 0.10.0
libtpu: 0.0.40
codegen_flags: <defaults>
</compile_context>

<pallas_src>
import functools
import math

import jax
import jax.numpy as jnp
from jax.experimental import pallas as pl
from jax.experimental.pallas import tpu as pltpu

HIDDEN = 256


def _round_up(x, m):
    return (x + m - 1) // m * m


def acnet_kernel(x_ref, w1_ref, b1_ref, w2_ref, b2_ref, hw_ref, hb_ref,
                 out_ref, *, n_actions):
    bf16 = jnp.bfloat16
    x = x_ref[...]                     # already bf16 + lane-dense (padded F)

    # layer1 + ReLU  (bf16 MXU dot, f32 accumulation)
    h = jnp.dot(x, w1_ref[...], preferred_element_type=jnp.float32) + b1_ref[...]
    h = jnp.maximum(h, 0.0)

    # layer2 + ReLU, then layer2 again (no ReLU) — the two W2 dots are
    # adjacent so the staged MXU weights can be reused.
    w2 = w2_ref[...]
    h = jnp.dot(h.astype(bf16), w2, preferred_element_type=jnp.float32) + b2_ref[...]
    h = jnp.maximum(h, 0.0)
    h = jnp.dot(h.astype(bf16), w2, preferred_element_type=jnp.float32) + b2_ref[...]

    # Fused heads: lanes [0, n_actions) = policy logits, lane n_actions =
    # value, remaining lanes zero-padded.  One lane-dense 128-wide matmul.
    head = (jnp.dot(h.astype(bf16), hw_ref[...],
                    preferred_element_type=jnp.float32) + hb_ref[...])

    lane = jax.lax.broadcasted_iota(jnp.int32, head.shape, 1)
    is_pi = lane < n_actions
    # Mask non-policy lanes before the softmax reductions so padded columns /
    # the value lane cannot contaminate max or sum.  -1e30 (not -inf) so an
    # all-masked row cannot produce inf - inf = NaN.
    logits = jnp.where(is_pi, head, jnp.float32(-1e30))
    m = jnp.max(logits, axis=-1, keepdims=True)
    e = jnp.exp(logits - m)                        # masked lanes underflow to 0
    denom = jnp.sum(e, axis=-1, keepdims=True)
    pi = e * pl.reciprocal(denom, approx=False)    # exact: keep sum(pi)==1

    # Lane layout of the output: softmax on pi lanes, raw head elsewhere
    # (lane n_actions carries the value; padded lanes are exactly 0).
    out_ref[...] = jnp.where(is_pi, pi, head)


@functools.partial(jax.jit, static_argnames=("n_actions", "block_b"))
def acnet_forward(x, w1, b1, w2, b2, head_w, head_b, *, n_actions, block_b=512):
    B, F = x.shape
    H = w1.shape[1]
    HL = head_w.shape[1]              # fused-head lane width (multiple of 128)

    # Stream x in bf16 (first dot consumes bf16 anyway) and make it lane-dense
    # by zero-padding the feature dim to a multiple of 128.
    x = x.astype(jnp.bfloat16)
    F_pad = _round_up(F, 128)
    TB = min(block_b, _round_up(B, 16))     # 16: bf16 sublane packing
    B_pad = _round_up(B, TB)
    if (B_pad, F_pad) != (B, F):
        x = jnp.pad(x, ((0, B_pad - B), (0, F_pad - F)))
    if F_pad != F:
        w1 = jnp.pad(w1, ((0, F_pad - F), (0, 0)))   # zero rows: no change
    grid = (B_pad // TB,)

    kernel = functools.partial(acnet_kernel, n_actions=n_actions)

    flops = 2 * B_pad * (F_pad * H + 2 * H * H + H * HL)
    bytes_accessed = (B_pad * F_pad * 2                     # x (bf16)
                      + (F_pad * H + H * H + H * HL) * 2    # bf16 weights
                      + (2 * H + HL) * 4                    # f32 biases
                      + B_pad * HL * 4)                     # output (f32)

    out = pl.pallas_call(
        kernel,
        out_shape=jax.ShapeDtypeStruct((B_pad, HL), jnp.float32),
        grid_spec=pltpu.PrefetchScalarGridSpec(
            num_scalar_prefetch=0,
            grid=grid,
            in_specs=[
                pl.BlockSpec((TB, F_pad), lambda i: (i, 0)),  # x: blocked batch
                pl.BlockSpec((F_pad, H), lambda i: (0, 0)),   # W1: VMEM-resident
                pl.BlockSpec((1, H), lambda i: (0, 0)),       # b1
                pl.BlockSpec((H, H), lambda i: (0, 0)),       # W2
                pl.BlockSpec((1, H), lambda i: (0, 0)),       # b2
                pl.BlockSpec((H, HL), lambda i: (0, 0)),      # fused head weight
                pl.BlockSpec((1, HL), lambda i: (0, 0)),      # fused head bias
            ],
            out_specs=pl.BlockSpec((TB, HL), lambda i: (i, 0)),
        ),
        compiler_params=pltpu.CompilerParams(
            dimension_semantics=("parallel",)),
        cost_estimate=pl.CostEstimate(
            flops=flops, transcendentals=B_pad * HL,
            bytes_accessed=bytes_accessed),
    )(x, w1, b1, w2, b2, head_w, head_b)

    pi = out[:B, :n_actions]
    value = out[:B, n_actions:n_actions + 1]
    return value, pi


def init_linear(key, fan_in, fan_out):
    """nn.Linear-style init U(-1/sqrt(fan_in), 1/sqrt(fan_in)).

    Weight returned as (fan_in, fan_out) (transpose of PyTorch layout),
    bias as (1, fan_out) for TPU-friendly broadcasting.
    """
    kw, kb = jax.random.split(key)
    bound = 1.0 / math.sqrt(fan_in)
    w = jax.random.uniform(kw, (fan_in, fan_out), jnp.float32, -bound, bound)
    b = jax.random.uniform(kb, (1, fan_out), jnp.float32, -bound, bound)
    return w, b


def fuse_heads(wv, bv, wp, bp, n_actions):
    """Pack Wp (H,n_actions) and Wv (H,1) into one zero-padded (H, 128k) weight."""
    H = wv.shape[0]
    head_lanes = _round_up(n_actions + 1, 128)
    head_w = jnp.zeros((H, head_lanes), jnp.float32)
    head_w = head_w.at[:, :n_actions].set(wp)
    head_w = head_w.at[:, n_actions].set(wv[:, 0])
    head_b = jnp.zeros((1, head_lanes), jnp.float32)
    head_b = head_b.at[:, :n_actions].set(bp)
    head_b = head_b.at[:, n_actions].set(bv[:, 0])
    return head_w, head_b


def reference_forward(x, w1, b1, w2, b2, head_w, head_b, n_actions):
    """Pure-JAX reference mirroring the kernel's bf16-weight / f32-accum math."""
    bf16 = jnp.bfloat16
    h = jnp.dot(x.astype(bf16), w1, preferred_element_type=jnp.float32) + b1
    h = jnp.maximum(h, 0.0)
    h = jnp.dot(h.astype(bf16), w2, preferred_element_type=jnp.float32) + b2
    h = jnp.maximum(h, 0.0)
    h = jnp.dot(h.astype(bf16), w2, preferred_element_type=jnp.float32) + b2
    head = jnp.dot(h.astype(bf16), head_w, preferred_element_type=jnp.float32) + head_b
    value = head[:, n_actions:n_actions + 1]
    logits = head[:, :n_actions]
    m = jnp.max(logits, axis=-1, keepdims=True)
    e = jnp.exp(logits - m)
    pi = e / jnp.sum(e, axis=-1, keepdims=True)
    return value, pi


if __name__ == "__main__":
    # Small shapes consistent with the module: batch=8, feature_space=32, n_actions=8
    B, FEATURE_SPACE, N_ACTIONS = 8, 32, 8

    key = jax.random.PRNGKey(0)
    kx, k1, k2, kv, kp = jax.random.split(key, 5)

    x = jax.random.normal(kx, (B, FEATURE_SPACE), jnp.float32)

    w1, b1 = init_linear(k1, FEATURE_SPACE, HIDDEN)
    w2, b2 = init_linear(k2, HIDDEN, HIDDEN)
    wv, bv = init_linear(kv, HIDDEN, 1)
    wp, bp = init_linear(kp, HIDDEN, N_ACTIONS)

    # Fuse the two heads and cast weights to bf16 at the wrapper boundary.
    head_w_f32, head_b = fuse_heads(wv, bv, wp, bp, N_ACTIONS)
    w1_bf = w1.astype(jnp.bfloat16)
    w2_bf = w2.astype(jnp.bfloat16)
    head_w_bf = head_w_f32.astype(jnp.bfloat16)

    value, pi = acnet_forward(x, w1_bf, b1, w2_bf, b2, head_w_bf, head_b,
                              n_actions=N_ACTIONS)
    jax.block_until_ready((value, pi))

    # Correctness check against a plain-JAX reference using identical bf16
    # weights and cast points (so the tolerance test is apples-to-apples).
    value_ref, pi_ref = reference_forward(x, w1_bf, b1, w2_bf, b2,
                                          head_w_bf, head_b, N_ACTIONS)
    assert value.shape == (B, 1) and pi.shape == (B, N_ACTIONS)
    assert jnp.allclose(value, value_ref, atol=1e-4, rtol=1e-4)
    assert jnp.allclose(pi, pi_ref, atol=1e-4, rtol=1e-4)
    assert jnp.allclose(jnp.sum(pi, axis=-1), 1.0, atol=1e-5)

    print("KERNEL_OK")
</pallas_src>

<mosaic_0001>
module attributes {stable_mosaic.version = 11 : i64} {
  func.func @acnet_kernel(%arg0: i32, %arg1: memref<16x128xbf16, #tpu.memory_space<vmem>>, %arg2: memref<128x256xbf16, #tpu.memory_space<vmem>>, %arg3: memref<1x256xf32, #tpu.memory_space<vmem>>, %arg4: memref<256x256xbf16, #tpu.memory_space<vmem>>, %arg5: memref<1x256xf32, #tpu.memory_space<vmem>>, %arg6: memref<256x128xbf16, #tpu.memory_space<vmem>>, %arg7: memref<1x128xf32, #tpu.memory_space<vmem>>, %arg8: memref<16x128xf32, #tpu.memory_space<vmem>>) attributes {dimension_semantics = [#tpu.dimension_semantics<parallel>], iteration_bounds = array<i64: 1>, scalar_prefetch = 0 : i64, scratch_operands = 0 : i64, tpu.core_type = #tpu.core_type<tc>, window_params = [{transform_indices = @transform_0, window_bounds = array<i64: 16, 128>}, {pipeline_mode = #tpu.pipeline_mode<synchronous>, transform_indices = @transform_1, window_bounds = array<i64: 128, 256>}, {pipeline_mode = #tpu.pipeline_mode<synchronous>, transform_indices = @transform_2, window_bounds = array<i64: 1, 256>}, {pipeline_mode = #tpu.pipeline_mode<synchronous>, transform_indices = @transform_3, window_bounds = array<i64: 256, 256>}, {pipeline_mode = #tpu.pipeline_mode<synchronous>, transform_indices = @transform_4, window_bounds = array<i64: 1, 256>}, {pipeline_mode = #tpu.pipeline_mode<synchronous>, transform_indices = @transform_5, window_bounds = array<i64: 256, 128>}, {pipeline_mode = #tpu.pipeline_mode<synchronous>, transform_indices = @transform_6, window_bounds = array<i64: 1, 128>}, {transform_indices = @transform_7, window_bounds = array<i64: 16, 128>}]} {
    %c0 = arith.constant 0 : index
    %c0_0 = arith.constant 0 : index
    %0 = vector.load %arg1[%c0, %c0_0] : memref<16x128xbf16, #tpu.memory_space<vmem>>, vector<16x128xbf16>
    %c0_1 = arith.constant 0 : index
    %c0_2 = arith.constant 0 : index
    %1 = vector.load %arg2[%c0_1, %c0_2] : memref<128x256xbf16, #tpu.memory_space<vmem>>, vector<128x256xbf16>
    %cst = arith.constant dense<0.000000e+00> : vector<16x256xf32>
    %2 = tpu.matmul %0, %1, %cst {dimension_numbers = #tpu.dot_dimension_numbers<[1], [0], [0], [1], [0, 0, 1, 1], [], []>} : vector<16x128xbf16>, vector<128x256xbf16>, vector<16x256xf32> -> vector<16x256xf32>
    %c0_3 = arith.constant 0 : index
    %c0_4 = arith.constant 0 : index
    %3 = vector.load %arg3[%c0_3, %c0_4] : memref<1x256xf32, #tpu.memory_space<vmem>>, vector<1x256xf32>
    %4 = vector.broadcast %3 : vector<1x256xf32> to vector<16x256xf32>
    %5 = arith.addf %2, %4 : vector<16x256xf32>
    %cst_5 = arith.constant 0.000000e+00 : f32
    %6 = vector.broadcast %cst_5 : f32 to vector<16x256xf32>
    %7 = arith.maximumf %5, %6 : vector<16x256xf32>
    %c0_6 = arith.constant 0 : index
    %c0_7 = arith.constant 0 : index
    %8 = vector.load %arg4[%c0_6, %c0_7] : memref<256x256xbf16, #tpu.memory_space<vmem>>, vector<256x256xbf16>
    %9 = arith.truncf %7 : vector<16x256xf32> to vector<16x256xbf16>
    %cst_8 = arith.constant dense<0.000000e+00> : vector<16x256xf32>
    %10 = tpu.matmul %9, %8, %cst_8 {dimension_numbers = #tpu.dot_dimension_numbers<[1], [0], [0], [1], [0, 0, 1, 1], [], []>} : vector<16x256xbf16>, vector<256x256xbf16>, vector<16x256xf32> -> vector<16x256xf32>
    %c0_9 = arith.constant 0 : index
    %c0_10 = arith.constant 0 : index
    %11 = vector.load %arg5[%c0_9, %c0_10] : memref<1x256xf32, #tpu.memory_space<vmem>>, vector<1x256xf32>
    %12 = vector.broadcast %11 : vector<1x256xf32> to vector<16x256xf32>
    %13 = arith.addf %10, %12 : vector<16x256xf32>
    %cst_11 = arith.constant 0.000000e+00 : f32
    %14 = vector.broadcast %cst_11 : f32 to vector<16x256xf32>
    %15 = arith.maximumf %13, %14 : vector<16x256xf32>
    %16 = arith.truncf %15 : vector<16x256xf32> to vector<16x256xbf16>
    %cst_12 = arith.constant dense<0.000000e+00> : vector<16x256xf32>
    %17 = tpu.matmul %16, %8, %cst_12 {dimension_numbers = #tpu.dot_dimension_numbers<[1], [0], [0], [1], [0, 0, 1, 1], [], []>} : vector<16x256xbf16>, vector<256x256xbf16>, vector<16x256xf32> -> vector<16x256xf32>
    %c0_13 = arith.constant 0 : index
    %c0_14 = arith.constant 0 : index
    %18 = vector.load %arg5[%c0_13, %c0_14] : memref<1x256xf32, #tpu.memory_space<vmem>>, vector<1x256xf32>
    %19 = vector.broadcast %18 : vector<1x256xf32> to vector<16x256xf32>
    %20 = arith.addf %17, %19 : vector<16x256xf32>
    %21 = arith.truncf %20 : vector<16x256xf32> to vector<16x256xbf16>
    %c0_15 = arith.constant 0 : index
    %c0_16 = arith.constant 0 : index
    %22 = vector.load %arg6[%c0_15, %c0_16] : memref<256x128xbf16, #tpu.memory_space<vmem>>, vector<256x128xbf16>
    %cst_17 = arith.constant dense<0.000000e+00> : vector<16x128xf32>
    %23 = tpu.matmul %21, %22, %cst_17 {dimension_numbers = #tpu.dot_dimension_numbers<[1], [0], [0], [1], [0, 0, 1, 1], [], []>} : vector<16x256xbf16>, vector<256x128xbf16>, vector<16x128xf32> -> vector<16x128xf32>
    %c0_18 = arith.constant 0 : index
    %c0_19 = arith.constant 0 : index
    %24 = vector.load %arg7[%c0_18, %c0_19] : memref<1x128xf32, #tpu.memory_space<vmem>>, vector<1x128xf32>
    %25 = vector.broadcast %24 : vector<1x128xf32> to vector<16x128xf32>
    %26 = arith.addf %23, %25 : vector<16x128xf32>
    %27 = tpu.iota {dimensions = array<i32: 1>} : vector<16x128xi32>
    %c8_i32 = arith.constant 8 : i32
    %28 = vector.broadcast %c8_i32 : i32 to vector<16x128xi32>
    %29 = arith.cmpi slt, %27, %28 : vector<16x128xi32>
    %cst_20 = arith.constant -1.000000e+30 : f32
    %30 = vector.broadcast %cst_20 : f32 to vector<16x128xf32>
    %31 = arith.select %29, %26, %30 : vector<16x128xi1>, vector<16x128xf32>
    %cst_21 = arith.constant dense<0xFF800000> : vector<16xf32>
    %32 = vector.multi_reduction <maximumf>, %31, %cst_21 [1] : vector<16x128xf32> to vector<16xf32>
    %33 = vector.shape_cast %32 : vector<16xf32> to vector<16x1xf32>
    %34 = vector.broadcast %33 : vector<16x1xf32> to vector<16x128xf32>
    %35 = arith.subf %31, %34 : vector<16x128xf32>
    %36 = math.exp %35 : vector<16x128xf32>
    %cst_22 = arith.constant dense<0.000000e+00> : vector<16xf32>
    %37 = vector.multi_reduction <add>, %36, %cst_22 [1] : vector<16x128xf32> to vector<16xf32>
    %38 = vector.shape_cast %37 : vector<16xf32> to vector<16x1xf32>
    %39 = tpu.reciprocal %38 : vector<16x1xf32> -> vector<16x1xf32>
    %40 = vector.broadcast %39 : vector<16x1xf32> to vector<16x128xf32>
    %41 = arith.mulf %36, %40 : vector<16x128xf32>
    %42 = arith.select %29, %41, %26 : vector<16x128xi1>, vector<16x128xf32>
    %c0_23 = arith.constant 0 : index
    %c0_24 = arith.constant 0 : index
    %43 = vector.load %arg8[%c0_23, %c0_24] : memref<16x128xf32, #tpu.memory_space<vmem>>, vector<16x128xf32>
    tpu.vector_store %arg8[%c0_23, %c0_24], %42 {strides = array<i32>} : memref<16x128xf32, #tpu.memory_space<vmem>>, vector<16x128xf32>,
    return
  }
  func.func @transform_0(%arg0: i32) -> (i32, i32) {
    %c0_i32 = arith.constant 0 : i32
    %c0_i32_0 = arith.constant 0 : i32
    return %arg0, %c0_i32 : i32, i32
  }
  func.func @transform_1(%arg0: i32) -> (i32, i32) {
    %c0_i32 = arith.constant 0 : i32
    %c0_i32_0 = arith.constant 0 : i32
    %c0_i32_1 = arith.constant 0 : i32
    return %c0_i32, %c0_i32_0 : i32, i32
  }
  func.func @transform_2(%arg0: i32) -> (i32, i32) {
    %c0_i32 = arith.constant 0 : i32
    %c0_i32_0 = arith.constant 0 : i32
    %c0_i32_1 = arith.constant 0 : i32
    return %c0_i32, %c0_i32_0 : i32, i32
  }
  func.func @transform_3(%arg0: i32) -> (i32, i32) {
    %c0_i32 = arith.constant 0 : i32
    %c0_i32_0 = arith.constant 0 : i32
    %c0_i32_1 = arith.constant 0 : i32
    return %c0_i32, %c0_i32_0 : i32, i32
  }
  func.func @transform_4(%arg0: i32) -> (i32, i32) {
    %c0_i32 = arith.constant 0 : i32
    %c0_i32_0 = arith.constant 0 : i32
    %c0_i32_1 = arith.constant 0 : i32
    return %c0_i32, %c0_i32_0 : i32, i32
  }
  func.func @transform_5(%arg0: i32) -> (i32, i32) {
    %c0_i32 = arith.constant 0 : i32
    %c0_i32_0 = arith.constant 0 : i32
    %c0_i32_1 = arith.constant 0 : i32
    return %c0_i32, %c0_i32_0 : i32, i32
  }
  func.func @transform_6(%arg0: i32) -> (i32, i32) {
    %c0_i32 = arith.constant 0 : i32
    %c0_i32_0 = arith.constant 0 : i32
    %c0_i32_1 = arith.constant 0 : i32
    return %c0_i32, %c0_i32_0 : i32, i32
  }
  func.func @transform_7(%arg0: i32) -> (i32, i32) {
    %c0_i32 = arith.constant 0 : i32
    %c0_i32_0 = arith.constant 0 : i32
    return %arg0, %c0_i32 : i32, i32
  }
}

</mosaic_0001>

<llo_original>
// kernel: acnet_forward.1
$region0: #{acnet_forward.1}
  #allocation0 [shape = 'u32[]', space=smem, size = 0x4, offset = 0x4, fixed_abs, tag = 'smem constant byte address 0x4 - core index']
  #allocation1 [shape = 'u32[72,128]{1,0:T(1,128)}', space=vmem, size = 0x9000, scoped, tag = 'internal scratch']
  %s0 = inlined_call_operand.vmem [shape: bf16[16,128], index: 0, kind: input, shape index: {}]
  %s1 = inlined_call_operand.vmem [shape: bf16[128,256], index: 1, kind: input, shape index: {}]
  %s2 = inlined_call_operand.vmem [shape: f32[1,256], index: 2, kind: input, shape index: {}]
  %s3 = inlined_call_operand.hbm [shape: bf16[256,256], index: 3, kind: input, shape index: {}]
  %s4 = inlined_call_operand.vmem [shape: f32[1,256], index: 4, kind: input, shape index: {}]
  %s5 = inlined_call_operand.vmem [shape: bf16[256,128], index: 5, kind: input, shape index: {}]
  %s6 = inlined_call_operand.vmem [shape: f32[1,128], index: 6, kind: input, shape index: {}]
  %s7 = inlined_call_operand.vmem [shape: f32[16,128], index: 7, kind: output, shape index: {}]
  %s8 = sld [smem:[#allocation0]]
  $region42: #{acnet_forward.1} parent=0
    _
  %s10 = ssub.s32 1, %s8
  %s11 = scalar_select 0, %s10, %s8
  $region1: #{acnet_forward.1} parent=0
    #allocation2 [shape = 'u8[131072]{0}', space=vmem, size = 0x20000, scoped, tag = 'input window, operand 3, single buffered']
    #allocation3 [shape = 's32[1]{0}', space=sflag, size = 0x4, scoped, tag = 'scoped memory for acnet_forward.1']
    %12 = vsyncpa [#allocation3], 0
    // Predicated region
    $region2: #{acnet_forward.1} parent=1 // pred_check
      _
    $region3: #{acnet_forward.1} parent=1 // pred_check_branch
      %14 = sbr.rel (0) target = $region5
    $region4: #{acnet_forward.1} parent=1 // pred_region
      _
    $region5: #{acnet_forward.1} parent=1 // pred_fallthru
      _
    // Predicated region
    $region6: #{acnet_forward.1} parent=1 // pred_check
      _
    $region7: #{acnet_forward.1} parent=1 // pred_check_branch
      %16 = sbr.rel (0) target = $region9
    $region8: #{acnet_forward.1} parent=1 // pred_region
      _
    $region9: #{acnet_forward.1} parent=1 // pred_fallthru
      _
    // Predicated region
    $region10: #{acnet_forward.1} parent=1 // pred_check
      _
    $region11: #{acnet_forward.1} parent=1 // pred_check_branch
      %18 = sbr.rel (0) target = $region13
    $region12: #{acnet_forward.1} parent=1 // pred_region
      _
    $region13: #{acnet_forward.1} parent=1 // pred_fallthru
      _
    // Predicated region
    $region14: #{acnet_forward.1} parent=1 // pred_check
      _
    $region15: #{acnet_forward.1} parent=1 // pred_check_branch
      %20 = sbr.rel (0) target = $region17
    $region16: #{acnet_forward.1} parent=1 // pred_region
      %22 = vsyncadd [#allocation3], 0
      %s23 = sshll.u32 %s3, 4
      %s24 = int_to_ptr.hbm [resolvable:$true] %s23
      %s25 = sshll.u32 [#allocation2], 4
      %s26 = int_to_ptr.vmem [resolvable:$true] %s25
      %31 = dma.hbm_to_vmem [thread:$0]  %s24, 4096, %s26, [#allocation3], 128, 128, 8
    $region17: #{acnet_forward.1} parent=1 // pred_fallthru
      _
    // Predicated region
    $region18: #{acnet_forward.1} parent=1 // pred_check
      _
    $region19: #{acnet_forward.1} parent=1 // pred_check_branch
      %33 = sbr.rel (0) target = $region21
    $region20: #{acnet_forward.1} parent=1 // pred_region
      _
    $region21: #{acnet_forward.1} parent=1 // pred_fallthru
      _
    // Predicated region
    $region22: #{acnet_forward.1} parent=1 // pred_check
      _
    $region23: #{acnet_forward.1} parent=1 // pred_check_branch
      %35 = sbr.rel (0) target = $region25
    $region24: #{acnet_forward.1} parent=1 // pred_region
      _
    $region25: #{acnet_forward.1} parent=1 // pred_fallthru
      _
    // Predicated region
    $region26: #{acnet_forward.1} parent=1 // pred_check
      _
    $region27: #{acnet_forward.1} parent=1 // pred_check_branch
      %37 = sbr.rel (0) target = $region29
    $region28: #{acnet_forward.1} parent=1 // pred_region
      _
    $region29: #{acnet_forward.1} parent=1 // pred_fallthru
      _
    // Predicated region
    $region30: #{acnet_forward.1} parent=1 // pred_check
      _
    $region31: #{acnet_forward.1} parent=1 // pred_check_branch
      %39 = sbr.rel (0) target = $region33
    $region32: #{acnet_forward.1} parent=1 // pred_region
      %41 = dma.done [#allocation3], 4096
    $region33: #{acnet_forward.1} parent=1 // pred_fallthru
      _
    %v42 = vld [vmem:[%s0] sm:$0xf]
    %v43 = vld [vmem:[%s0 + $0x4] sm:$0xf]
    %v44 = vld [vmem:[%s1] sm:$0xff]
    %v45 = vld [vmem:[%s1 + $0x8] sm:$0xff]
    %v46 = vld [vmem:[%s1 + $0x10] sm:$0xff]
    %v47 = vld [vmem:[%s1 + $0x18] sm:$0xff]
    %v48 = vld [vmem:[%s1 + $0x20] sm:$0xff]
    %v49 = vld [vmem:[%s1 + $0x28] sm:$0xff]
    %v50 = vld [vmem:[%s1 + $0x30] sm:$0xff]
    %v51 = vld [vmem:[%s1 + $0x38] sm:$0xff]
    %v52 = vld [vmem:[%s1 + $0x40] sm:$0xff]
    %v53 = vld [vmem:[%s1 + $0x48] sm:$0xff]
    %v54 = vld [vmem:[%s1 + $0x50] sm:$0xff]
    %v55 = vld [vmem:[%s1 + $0x58] sm:$0xff]
    %v56 = vld [vmem:[%s1 + $0x60] sm:$0xff]
    %v57 = vld [vmem:[%s1 + $0x68] sm:$0xff]
    %v58 = vld [vmem:[%s1 + $0x70] sm:$0xff]
    %v59 = vld [vmem:[%s1 + $0x78] sm:$0xff]
    %v60 = vld [vmem:[%s2] sm:$0x3]
    %v62 = vperm.slane %v60, 0
    %v63 = vperm.slane %v60, 1
    %v68 = vunpack.c.l.b16 %v42
    %v69 = vunpack.c.l.b16 %v43
    %v70 = vpack.c.b16 %v69, %v68
    %v88 = vunpack.c.l.b16 %v44
    %v89 = vunpack.c.h.b16 %v44
    %v90 = vunpack.c.l.b16 %v45
    %v91 = vunpack.c.h.b16 %v45
    %v92 = vunpack.c.l.b16 %v46
    %v93 = vunpack.c.h.b16 %v46
    %v94 = vunpack.c.l.b16 %v47
    %v95 = vunpack.c.h.b16 %v47
    %v96 = vunpack.c.l.b16 %v48
    %v97 = vunpack.c.h.b16 %v48
    %v98 = vunpack.c.l.b16 %v49
    %v99 = vunpack.c.h.b16 %v49
    %v100 = vunpack.c.l.b16 %v50
    %v101 = vunpack.c.h.b16 %v50
    %v102 = vunpack.c.l.b16 %v51
    %v103 = vunpack.c.h.b16 %v51
    %v104 = vunpack.c.l.b16 %v52
    %v105 = vunpack.c.h.b16 %v52
    %v106 = vunpack.c.l.b16 %v53
    %v107 = vunpack.c.h.b16 %v53
    %v108 = vunpack.c.l.b16 %v54
    %v109 = vunpack.c.h.b16 %v54
    %v110 = vunpack.c.l.b16 %v55
    %v111 = vunpack.c.h.b16 %v55
    %v112 = vunpack.c.l.b16 %v56
    %v113 = vunpack.c.h.b16 %v56
    %v114 = vunpack.c.l.b16 %v57
    %v115 = vunpack.c.h.b16 %v57
    %v116 = vunpack.c.l.b16 %v58
    %v117 = vunpack.c.h.b16 %v58
    %v118 = vunpack.c.l.b16 %v59
    %v119 = vunpack.c.h.b16 %v59
    %v120 = vpack.c.b16 %v90, %v88
    %v121 = vpack.c.b16 %v91, %v89
    %v122 = vpack.c.b16 %v94, %v92
    %v123 = vpack.c.b16 %v95, %v93
    %v124 = vpack.c.b16 %v98, %v96
    %v125 = vpack.c.b16 %v99, %v97
    %v126 = vpack.c.b16 %v102, %v100
    %v127 = vpack.c.b16 %v103, %v101
    %v128 = vpack.c.b16 %v106, %v104
    %v129 = vpack.c.b16 %v107, %v105
    %v130 = vpack.c.b16 %v110, %v108
    %v131 = vpack.c.b16 %v111, %v109
    %v132 = vpack.c.b16 %v114, %v112
    %v133 = vpack.c.b16 %v115, %v113
    %v134 = vpack.c.b16 %v118, %v116
    %v135 = vpack.c.b16 %v119, %v117
    %152 = vmatpush.bf16.msra.mxu0 %v134
    %153 = vmatpush.bf16.msra.mxu0 %v132
    %154 = vmatpush.bf16.msra.mxu0 %v130
    %155 = vmatpush.bf16.msra.mxu0 %v128
    %156 = vmatpush.bf16.msra.mxu0 %v126
    %157 = vmatpush.bf16.msra.mxu0 %v124
    %158 = vmatpush.bf16.msra.mxu0 %v122
    %159 = vmatpush.bf16.msra.mxu0 %v120
    %160 = vmatmul.bf16.gmra.mxu0 %v70
    %v161 = vpop.f32.mrf.mxu0
    %v162 = vadd.f32 %v62, %v161
    %v163 = vpop.f32.mrf.mxu0
    %v164 = vadd.f32 %v62, %v163
    %165 = vdwg.mxu0
    %166 = vmatpush.bf16.msra.mxu0 %v135
    %167 = vmatpush.bf16.msra.mxu0 %v133
    %168 = vmatpush.bf16.msra.mxu0 %v131
    %169 = vmatpush.bf16.msra.mxu0 %v129
    %170 = vmatpush.bf16.msra.mxu0 %v127
    %171 = vmatpush.bf16.msra.mxu0 %v125
    %172 = vmatpush.bf16.msra.mxu0 %v123
    %173 = vmatpush.bf16.msra.mxu0 %v121
    %174 = vmatmul.bf16.gmra.mxu0 %v70
    %v175 = vpop.f32.mrf.mxu0
    %v176 = vadd.f32 %v63, %v175
    %v177 = vpop.f32.mrf.mxu0
    %v178 = vadd.f32 %v63, %v177
    %179 = vdwg.mxu0
    %v180 = vmax.f32 %v162, 0.0
    %v181 = vmax.f32 %v176, 0.0
    %v182 = vmax.f32 %v164, 0.0
    %v183 = vmax.f32 %v178, 0.0
    %v184 = vld [vmem:[#allocation2] sm:$0xff]
    %v185 = vld [vmem:[#allocation2 + $0x8] sm:$0xff]
    %v186 = vld [vmem:[#allocation2 + $0x10] sm:$0xff]
    %v187 = vld [vmem:[#allocation2 + $0x18] sm:$0xff]
    %v188 = vld [vmem:[#allocation2 + $0x20] sm:$0xff]
    %v189 = vld [vmem:[#allocation2 + $0x28] sm:$0xff]
    %v190 = vld [vmem:[#allocation2 + $0x30] sm:$0xff]
    %v191 = vld [vmem:[#allocation2 + $0x38] sm:$0xff]
    %v192 = vld [vmem:[#allocation2 + $0x40] sm:$0xff]
    %v193 = vld [vmem:[#allocation2 + $0x48] sm:$0xff]
    %v194 = vld [vmem:[#allocation2 + $0x50] sm:$0xff]
    %v195 = vld [vmem:[#allocation2 + $0x58] sm:$0xff]
    %v196 = vld [vmem:[#allocation2 + $0x60] sm:$0xff]
    %v197 = vld [vmem:[#allocation2 + $0x68] sm:$0xff]
    %v198 = vld [vmem:[#allocation2 + $0x70] sm:$0xff]
    %v199 = vld [vmem:[#allocation2 + $0x78] sm:$0xff]
    %v200 = vld [vmem:[#allocation2 + $0x80] sm:$0xff]
    %v201 = vld [vmem:[#allocation2 + $0x88] sm:$0xff]
    %v202 = vld [vmem:[#allocation2 + $0x90] sm:$0xff]
    %v203 = vld [vmem:[#allocation2 + $0x98] sm:$0xff]
    %v204 = vld [vmem:[#allocation2 + $0xa0] sm:$0xff]
    %v205 = vld [vmem:[#allocation2 + $0xa8] sm:$0xff]
    %v206 = vld [vmem:[#allocation2 + $0xb0] sm:$0xff]
    %v207 = vld [vmem:[#allocation2 + $0xb8] sm:$0xff]
    %v208 = vld [vmem:[#allocation2 + $0xc0] sm:$0xff]
    %v209 = vld [vmem:[#allocation2 + $0xc8] sm:$0xff]
    %v210 = vld [vmem:[#allocation2 + $0xd0] sm:$0xff]
    %v211 = vld [vmem:[#allocation2 + $0xd8] sm:$0xff]
    %v212 = vld [vmem:[#allocation2 + $0xe0] sm:$0xff]
    %v213 = vld [vmem:[#allocation2 + $0xe8] sm:$0xff]
    %v214 = vld [vmem:[#allocation2 + $0xf0] sm:$0xff]
    %v215 = vld [vmem:[#allocation2 + $0xf8] sm:$0xff]
    %v216 = vpack.c.bf16 %v182, %v180
    %v217 = vpack.c.bf16 %v183, %v181
    %v218 = vld [vmem:[%s4] sm:$0x3]
    %v220 = vperm.slane %v218, 0
    %v221 = vperm.slane %v218, 1
    %v256 = vunpack.c.l.b16 %v184
    %v257 = vunpack.c.h.b16 %v184
    %v258 = vunpack.c.l.b16 %v185
    %v259 = vunpack.c.h.b16 %v185
    %v260 = vunpack.c.l.b16 %v186
    %v261 = vunpack.c.h.b16 %v186
    %v262 = vunpack.c.l.b16 %v187
    %v263 = vunpack.c.h.b16 %v187
    %v264 = vunpack.c.l.b16 %v188
    %v265 = vunpack.c.h.b16 %v188
    %v266 = vunpack.c.l.b16 %v189
    %v267 = vunpack.c.h.b16 %v189
    %v268 = vunpack.c.l.b16 %v190
    %v269 = vunpack.c.h.b16 %v190
    %v270 = vunpack.c.l.b16 %v191
    %v271 = vunpack.c.h.b16 %v191
    %v272 = vunpack.c.l.b16 %v192
    %v273 = vunpack.c.h.b16 %v192
    %v274 = vunpack.c.l.b16 %v193
    %v275 = vunpack.c.h.b16 %v193
    %v276 = vunpack.c.l.b16 %v194
    %v277 = vunpack.c.h.b16 %v194
    %v278 = vunpack.c.l.b16 %v195
    %v279 = vunpack.c.h.b16 %v195
    %v280 = vunpack.c.l.b16 %v196
    %v281 = vunpack.c.h.b16 %v196
    %v282 = vunpack.c.l.b16 %v197
    %v283 = vunpack.c.h.b16 %v197
    %v284 = vunpack.c.l.b16 %v198
    %v285 = vunpack.c.h.b16 %v198
    %v286 = vunpack.c.l.b16 %v199
    %v287 = vunpack.c.h.b16 %v199
    %v288 = vunpack.c.l.b16 %v200
    %v289 = vunpack.c.h.b16 %v200
    %v290 = vunpack.c.l.b16 %v201
    %v291 = vunpack.c.h.b16 %v201
    %v292 = vunpack.c.l.b16 %v202
    %v293 = vunpack.c.h.b16 %v202
    %v294 = vunpack.c.l.b16 %v203
    %v295 = vunpack.c.h.b16 %v203
    %v296 = vunpack.c.l.b16 %v204
    %v297 = vunpack.c.h.b16 %v204
    %v298 = vunpack.c.l.b16 %v205
    %v299 = vunpack.c.h.b16 %v205
    %v300 = vunpack.c.l.b16 %v206
    %v301 = vunpack.c.h.b16 %v206
    %v302 = vunpack.c.l.b16 %v207
    %v303 = vunpack.c.h.b16 %v207
    %v304 = vunpack.c.l.b16 %v208
    %v305 = vunpack.c.h.b16 %v208
    %v306 = vunpack.c.l.b16 %v209
    %v307 = vunpack.c.h.b16 %v209
    %v308 = vunpack.c.l.b16 %v210
    %v309 = vunpack.c.h.b16 %v210
    %v310 = vunpack.c.l.b16 %v211
    %v311 = vunpack.c.h.b16 %v211
    %v312 = vunpack.c.l.b16 %v212
    %v313 = vunpack.c.h.b16 %v212
    %v314 = vunpack.c.l.b16 %v213
    %v315 = vunpack.c.h.b16 %v213
    %v316 = vunpack.c.l.b16 %v214
    %v317 = vunpack.c.h.b16 %v214
    %v318 = vunpack.c.l.b16 %v215
    %v319 = vunpack.c.h.b16 %v215
    %v320 = vpack.c.b16 %v258, %v256
    %v321 = vpack.c.b16 %v259, %v257
    %v322 = vpack.c.b16 %v262, %v260
    %v323 = vpack.c.b16 %v263, %v261
    %v324 = vpack.c.b16 %v266, %v264
    %v325 = vpack.c.b16 %v267, %v265
    %v326 = vpack.c.b16 %v270, %v268
    %v327 = vpack.c.b16 %v271, %v269
    %v328 = vpack.c.b16 %v274, %v272
    %v329 = vpack.c.b16 %v275, %v273
    %v330 = vpack.c.b16 %v278, %v276
    %v331 = vpack.c.b16 %v279, %v277
    %v332 = vpack.c.b16 %v282, %v280
    %v333 = vpack.c.b16 %v283, %v281
    %v334 = vpack.c.b16 %v286, %v284
    %v335 = vpack.c.b16 %v287, %v285
    %v336 = vpack.c.b16 %v290, %v288
    %v337 = vpack.c.b16 %v291, %v289
    %v338 = vpack.c.b16 %v294, %v292
    %v339 = vpack.c.b16 %v295, %v293
    %v340 = vpack.c.b16 %v298, %v296
    %v341 = vpack.c.b16 %v299, %v297
    %v342 = vpack.c.b16 %v302, %v300
    %v343 = vpack.c.b16 %v303, %v301
    %v344 = vpack.c.b16 %v306, %v304
    %v345 = vpack.c.b16 %v307, %v305
    %v346 = vpack.c.b16 %v310, %v308
    %v347 = vpack.c.b16 %v311, %v309
    %v348 = vpack.c.b16 %v314, %v312
    %v349 = vpack.c.b16 %v315, %v313
    %v350 = vpack.c.b16 %v318, %v316
    %v351 = vpack.c.b16 %v319, %v317
    %384 = vmatpush.bf16.msra.mxu0 %v334
    %385 = vmatpush.bf16.msra.mxu0 %v332
    %386 = vmatpush.bf16.msra.mxu0 %v330
    %387 = vmatpush.bf16.msra.mxu0 %v328
    %388 = vmatpush.bf16.msra.mxu0 %v326
    %389 = vmatpush.bf16.msra.mxu0 %v324
    %390 = vmatpush.bf16.msra.mxu0 %v322
    %391 = vmatpush.bf16.msra.mxu0 %v320
    %392 = vmatmul.bf16.gmra.mxu0 %v216
    %v393 = vpop.f32.mrf.mxu0
    %v394 = vadd.f32 %v220, %v393
    %v395 = vpop.f32.mrf.mxu0
    %v396 = vadd.f32 %v220, %v395
    %397 = vdwg.mxu0
    %398 = vmatpush.bf16.msra.mxu0 %v350
    %399 = vmatpush.bf16.msra.mxu0 %v348
    %400 = vmatpush.bf16.msra.mxu0 %v346
    %401 = vmatpush.bf16.msra.mxu0 %v344
    %402 = vmatpush.bf16.msra.mxu0 %v342
    %403 = vmatpush.bf16.msra.mxu0 %v340
    %404 = vmatpush.bf16.msra.mxu0 %v338
    %405 = vmatpush.bf16.msra.mxu0 %v336
    %406 = vmatmul.bf16.gmra.mxu0 %v217
    %v407 = vpop.f32.mrf.mxu0
    %v408 = vadd.f32 %v394, %v407
    %v409 = vpop.f32.mrf.mxu0
    %v410 = vadd.f32 %v396, %v409
    %411 = vdwg.mxu0
    %412 = vmatpush.bf16.msra.mxu0 %v335
    %413 = vmatpush.bf16.msra.mxu0 %v333
    %414 = vmatpush.bf16.msra.mxu0 %v331
    %415 = vmatpush.bf16.msra.mxu0 %v329
    %416 = vmatpush.bf16.msra.mxu0 %v327
    %417 = vmatpush.bf16.msra.mxu0 %v325
    %418 = vmatpush.bf16.msra.mxu0 %v323
    %419 = vmatpush.bf16.msra.mxu0 %v321
    %420 = vmatmul.bf16.gmra.mxu0 %v216
    %v421 = vpop.f32.mrf.mxu0
    %v422 = vadd.f32 %v221, %v421
    %v423 = vpop.f32.mrf.mxu0
    %v424 = vadd.f32 %v221, %v423
    %425 = vdwg.mxu0
    %426 = vmatpush.bf16.msra.mxu0 %v351
    %427 = vmatpush.bf16.msra.mxu0 %v349
    %428 = vmatpush.bf16.msra.mxu0 %v347
    %429 = vmatpush.bf16.msra.mxu0 %v345
    %430 = vmatpush.bf16.msra.mxu0 %v343
    %431 = vmatpush.bf16.msra.mxu0 %v341
    %432 = vmatpush.bf16.msra.mxu0 %v339
    %433 = vmatpush.bf16.msra.mxu0 %v337
    %434 = vmatmul.bf16.gmra.mxu0 %v217
    %v435 = vpop.f32.mrf.mxu0
    %v436 = vadd.f32 %v422, %v435
    %v437 = vpop.f32.mrf.mxu0
    %v438 = vadd.f32 %v424, %v437
    %439 = vdwg.mxu0
    %v440 = vmax.f32 %v408, 0.0
    %v441 = vmax.f32 %v436, 0.0
    %v442 = vmax.f32 %v410, 0.0
    %v443 = vmax.f32 %v438, 0.0
    %v444 = vpack.c.bf16 %v442, %v440
    %v445 = vpack.c.bf16 %v443, %v441
    %446 = vmatpush.bf16.msra.mxu0 %v334
    %447 = vmatpush.bf16.msra.mxu0 %v332
    %448 = vmatpush.bf16.msra.mxu0 %v330
    %449 = vmatpush.bf16.msra.mxu0 %v328
    %450 = vmatpush.bf16.msra.mxu0 %v326
    %451 = vmatpush.bf16.msra.mxu0 %v324
    %452 = vmatpush.bf16.msra.mxu0 %v322
    %453 = vmatpush.bf16.msra.mxu0 %v320
    %454 = vmatmul.bf16.gmra.mxu0 %v444
    %v455 = vpop.f32.mrf.mxu0
    %v456 = vadd.f32 %v220, %v455
    %v457 = vpop.f32.mrf.mxu0
    %v458 = vadd.f32 %v220, %v457
    %459 = vdwg.mxu0
    %460 = vmatpush.bf16.msra.mxu0 %v350
    %461 = vmatpush.bf16.msra.mxu0 %v348
    %462 = vmatpush.bf16.msra.mxu0 %v346
    %463 = vmatpush.bf16.msra.mxu0 %v344
    %464 = vmatpush.bf16.msra.mxu0 %v342
    %465 = vmatpush.bf16.msra.mxu0 %v340
    %466 = vmatpush.bf16.msra.mxu0 %v338
    %467 = vmatpush.bf16.msra.mxu0 %v336
    %468 = vmatmul.bf16.gmra.mxu0 %v445
    %v469 = vpop.f32.mrf.mxu0
    %v470 = vadd.f32 %v456, %v469
    %v471 = vpop.f32.mrf.mxu0
    %v472 = vadd.f32 %v458, %v471
    %473 = vdwg.mxu0
    %474 = vmatpush.bf16.msra.mxu0 %v335
    %475 = vmatpush.bf16.msra.mxu0 %v333
    %476 = vmatpush.bf16.msra.mxu0 %v331
    %477 = vmatpush.bf16.msra.mxu0 %v329
    %478 = vmatpush.bf16.msra.mxu0 %v327
    %479 = vmatpush.bf16.msra.mxu0 %v325
    %480 = vmatpush.bf16.msra.mxu0 %v323
    %481 = vmatpush.bf16.msra.mxu0 %v321
    %482 = vmatmul.bf16.gmra.mxu0 %v444
    %v483 = vpop.f32.mrf.mxu0
    %v484 = vadd.f32 %v221, %v483
    %v485 = vpop.f32.mrf.mxu0
    %v486 = vadd.f32 %v221, %v485
    %487 = vdwg.mxu0
    %488 = vmatpush.bf16.msra.mxu0 %v351
    %489 = vmatpush.bf16.msra.mxu0 %v349
    %490 = vmatpush.bf16.msra.mxu0 %v347
    %491 = vmatpush.bf16.msra.mxu0 %v345
    %492 = vmatpush.bf16.msra.mxu0 %v343
    %493 = vmatpush.bf16.msra.mxu0 %v341
    %494 = vmatpush.bf16.msra.mxu0 %v339
    %495 = vmatpush.bf16.msra.mxu0 %v337
    %496 = vmatmul.bf16.gmra.mxu0 %v445
    %v497 = vpop.f32.mrf.mxu0
    %v498 = vadd.f32 %v484, %v497
    %v499 = vpop.f32.mrf.mxu0
    %v500 = vadd.f32 %v486, %v499
    %501 = vdwg.mxu0
    %v502 = vpack.c.bf16 %v472, %v470
    %v503 = vpack.c.bf16 %v500, %v498
    %v504 = vld [vmem:[%s5] sm:$0xf]
    %v505 = vld [vmem:[%s5 + $0x4] sm:$0xf]
    %v506 = vld [vmem:[%s5 + $0x8] sm:$0xf]
    %v507 = vld [vmem:[%s5 + $0xc] sm:$0xf]
    %v508 = vld [vmem:[%s5 + $0x10] sm:$0xf]
    %v509 = vld [vmem:[%s5 + $0x14] sm:$0xf]
    %v510 = vld [vmem:[%s5 + $0x18] sm:$0xf]
    %v511 = vld [vmem:[%s5 + $0x1c] sm:$0xf]
    %v512 = vld [vmem:[%s5 + $0x20] sm:$0xf]
    %v513 = vld [vmem:[%s5 + $0x24] sm:$0xf]
    %v514 = vld [vmem:[%s5 + $0x28] sm:$0xf]
    %v515 = vld [vmem:[%s5 + $0x2c] sm:$0xf]
    %v516 = vld [vmem:[%s5 + $0x30] sm:$0xf]
    %v517 = vld [vmem:[%s5 + $0x34] sm:$0xf]
    %v518 = vld [vmem:[%s5 + $0x38] sm:$0xf]
    %v519 = vld [vmem:[%s5 + $0x3c] sm:$0xf]
    %v520 = vld [vmem:[%s5 + $0x40] sm:$0xf]
    %v521 = vld [vmem:[%s5 + $0x44] sm:$0xf]
    %v522 = vld [vmem:[%s5 + $0x48] sm:$0xf]
    %v523 = vld [vmem:[%s5 + $0x4c] sm:$0xf]
    %v524 = vld [vmem:[%s5 + $0x50] sm:$0xf]
    %v525 = vld [vmem:[%s5 + $0x54] sm:$0xf]
    %v526 = vld [vmem:[%s5 + $0x58] sm:$0xf]
    %v527 = vld [vmem:[%s5 + $0x5c] sm:$0xf]
    %v528 = vld [vmem:[%s5 + $0x60] sm:$0xf]
    %v529 = vld [vmem:[%s5 + $0x64] sm:$0xf]
    %v530 = vld [vmem:[%s5 + $0x68] sm:$0xf]
    %v531 = vld [vmem:[%s5 + $0x6c] sm:$0xf]
    %v532 = vld [vmem:[%s5 + $0x70] sm:$0xf]
    %v533 = vld [vmem:[%s5 + $0x74] sm:$0xf]
    %v534 = vld [vmem:[%s5 + $0x78] sm:$0xf]
    %v535 = vld [vmem:[%s5 + $0x7c] sm:$0xf]
    %v536 = vld [vmem:[%s6] sm:$0x1]
    %v538 = vperm.slane %v536, 0
    %v572 = vunpack.c.l.b16 %v504
    %v573 = vunpack.c.l.b16 %v505
    %v574 = vunpack.c.l.b16 %v506
    %v575 = vunpack.c.l.b16 %v507
    %v576 = vunpack.c.l.b16 %v508
    %v577 = vunpack.c.l.b16 %v509
    %v578 = vunpack.c.l.b16 %v510
    %v579 = vunpack.c.l.b16 %v511
    %v580 = vunpack.c.l.b16 %v512
    %v581 = vunpack.c.l.b16 %v513
    %v582 = vunpack.c.l.b16 %v514
    %v583 = vunpack.c.l.b16 %v515
    %v584 = vunpack.c.l.b16 %v516
    %v585 = vunpack.c.l.b16 %v517
    %v586 = vunpack.c.l.b16 %v518
    %v587 = vunpack.c.l.b16 %v519
    %v588 = vunpack.c.l.b16 %v520
    %v589 = vunpack.c.l.b16 %v521
    %v590 = vunpack.c.l.b16 %v522
    %v591 = vunpack.c.l.b16 %v523
    %v592 = vunpack.c.l.b16 %v524
    %v593 = vunpack.c.l.b16 %v525
    %v594 = vunpack.c.l.b16 %v526
    %v595 = vunpack.c.l.b16 %v527
    %v596 = vunpack.c.l.b16 %v528
    %v597 = vunpack.c.l.b16 %v529
    %v598 = vunpack.c.l.b16 %v530
    %v599 = vunpack.c.l.b16 %v531
    %v600 = vunpack.c.l.b16 %v532
    %v601 = vunpack.c.l.b16 %v533
    %v602 = vunpack.c.l.b16 %v534
    %v603 = vunpack.c.l.b16 %v535
    %v604 = vpack.c.b16 %v573, %v572
    %v605 = vpack.c.b16 %v575, %v574
    %v606 = vpack.c.b16 %v577, %v576
    %v607 = vpack.c.b16 %v579, %v578
    %v608 = vpack.c.b16 %v581, %v580
    %v609 = vpack.c.b16 %v583, %v582
    %v610 = vpack.c.b16 %v585, %v584
    %v611 = vpack.c.b16 %v587, %v586
    %v612 = vpack.c.b16 %v589, %v588
    %v613 = vpack.c.b16 %v591, %v590
    %v614 = vpack.c.b16 %v593, %v592
    %v615 = vpack.c.b16 %v595, %v594
    %v616 = vpack.c.b16 %v597, %v596
    %v617 = vpack.c.b16 %v599, %v598
    %v618 = vpack.c.b16 %v601, %v600
    %v619 = vpack.c.b16 %v603, %v602
    %636 = vmatpush.bf16.msra.mxu0 %v611
    %637 = vmatpush.bf16.msra.mxu0 %v610
    %638 = vmatpush.bf16.msra.mxu0 %v609
    %639 = vmatpush.bf16.msra.mxu0 %v608
    %640 = vmatpush.bf16.msra.mxu0 %v607
    %641 = vmatpush.bf16.msra.mxu0 %v606
    %642 = vmatpush.bf16.msra.mxu0 %v605
    %643 = vmatpush.bf16.msra.mxu0 %v604
    %644 = vmatmul.bf16.gmra.mxu0 %v502
    %v645 = vpop.f32.mrf.mxu0
    %v646 = vadd.f32 %v538, %v645
    %v647 = vpop.f32.mrf.mxu0
    %v648 = vadd.f32 %v538, %v647
    %649 = vdwg.mxu0
    %650 = vmatpush.bf16.msra.mxu0 %v619
    %651 = vmatpush.bf16.msra.mxu0 %v618
    %652 = vmatpush.bf16.msra.mxu0 %v617
    %653 = vmatpush.bf16.msra.mxu0 %v616
    %654 = vmatpush.bf16.msra.mxu0 %v615
    %655 = vmatpush.bf16.msra.mxu0 %v614
    %656 = vmatpush.bf16.msra.mxu0 %v613
    %657 = vmatpush.bf16.msra.mxu0 %v612
    %658 = vmatmul.bf16.gmra.mxu0 %v503
    %v659 = vpop.f32.mrf.mxu0
    %v660 = vadd.f32 %v646, %v659
    %v661 = vpop.f32.mrf.mxu0
    %v662 = vadd.f32 %v648, %v661
    %663 = vdwg.mxu0
    %v664 = vlaneseq
    %v665 = vand.u32 %v664, 127
    %vm666 = vcmp.lt.s32.totalorder %v665, 8
    %v667 = vsel %vm666, %v660, -1e+30
    %v668 = vsel %vm666, %v662, -1e+30
    %669 = vmax.xlane.f32.xlu0 %v667
    %v670 = vpop.xlane.xlu0 %669
    %671 = vmax.xlane.f32.xlu0 %v668
    %v672 = vpop.xlane.xlu0 %671
    %v673 = vsub.f32 %v667, %v670
    %v674 = vsub.f32 %v668, %v672
    %v675 = vmul.f32 %v673, 1.442695
    %v676 = vpow.pop %v675
    %v677 = vmul.f32 %v674, 1.442695
    %v678 = vpow.pop %v677
    %679 = vadd.xlane.f32.xlu0 %v676
    %v680 = vpop.xlane.xlu0 %679
    %681 = vadd.xlane.f32.xlu0 %v678
    %v682 = vpop.xlane.xlu0 %681
    %v683 = vrcp.pop %v680
    %v684 = vmul.f32 %v680, %v683
    %v685 = vsub.f32 1.0, %v684
    %v686 = vmul.f32 %v683, %v685
    %v687 = vadd.f32 %v683, %v686
    %vm688 = vweird.f32 %v680
    %vm689 = vweird.f32 %v683
    %vm690 = vmor %vm688, %vm689
    %v691 = vsel %vm690, %v683, %v687
    %v692 = vand.u32 2147483647, %v680
    %vm693 = vcmp.eq.f32.partialorder %v692, 8.507059e+37
    %v694 = vand.u32 %v680, 2147483648
    %v695 = vor.u32 1.1754944e-38, %v694
    %v696 = vsel %vm693, %v695, %v691
    %v697 = vrcp.pop %v682
    %v698 = vmul.f32 %v682, %v697
    %v699 = vsub.f32 1.0, %v698
    %v700 = vmul.f32 %v697, %v699
    %v701 = vadd.f32 %v697, %v700
    %vm702 = vweird.f32 %v682
    %vm703 = vweird.f32 %v697
    %vm704 = vmor %vm702, %vm703
    %v705 = vsel %vm704, %v697, %v701
    %v706 = vand.u32 2147483647, %v682
    %vm707 = vcmp.eq.f32.partialorder %v706, 8.507059e+37
    %v708 = vand.u32 %v682, 2147483648
    %v709 = vor.u32 1.1754944e-38, %v708
    %v710 = vsel %vm707, %v709, %v705
    %v711 = vmul.f32 %v676, %v696
    %v712 = vmul.f32 %v678, %v710
    %v713 = vsel %vm666, %v711, %v660
    %v714 = vsel %vm666, %v712, %v662
    %715 = vst [vmem:[%s7] sm:$0xff] %v713
    %716 = vst [vmem:[%s7 + $0x8] sm:$0xff] %v714
    // Predicated region
    $region34: #{acnet_forward.1} parent=1 // pred_check
      _
    $region35: #{acnet_forward.1} parent=1 // pred_check_branch
      %718 = sbr.rel (0) target = $region37
    $region36: #{acnet_forward.1} parent=1 // pred_region
      _
    $region37: #{acnet_forward.1} parent=1 // pred_fallthru
      _
    // Predicated region
    $region38: #{acnet_forward.1} parent=1 // pred_check
      _
    $region39: #{acnet_forward.1} parent=1 // pred_check_branch
      %720 = sbr.rel (0) target = $region41
    $region40: #{acnet_forward.1} parent=1 // pred_region
      _
    $region41: #{acnet_forward.1} parent=1 // pred_fallthru
      _
    %721 = vsyncpa [#allocation3], 1

</llo_original>
